<compile_context>
chip_gen: v7x
topology: tpu7x:2x2x1
jax: 0.10.0
libtpu: 0.0.40
codegen_flags: <defaults>
</compile_context>

<pallas_src>
import math

import jax
import jax.numpy as jnp
from jax.experimental import pallas as pl
from jax.experimental.pallas import tpu as pltpu


# ---------------------------------------------------------------------------
# helpers
# ---------------------------------------------------------------------------

def _round_up(x, m):
    return ((x + m - 1) // m) * m


def _pick_tile_rows(n, d, max_rows=4096, max_block_bytes=4 << 20):
    """Row-tile size: multiple of 8, big enough to amortize per-grid-step
    overhead (~4 MiB blocks), capped at ~ceil(n/2) so v7x's two TensorCores
    both get work, and small enough to stay far below scoped VMEM."""
    tn = min(max_rows, _round_up(n, 8))
    cap = max(8, ((max_block_bytes // max(d * 4, 1)) // 8) * 8)
    tn = max(8, min(tn, cap))
    if n > 8:
        half = max(8, _round_up(-(-n // 2), 8))
        tn = min(tn, half)
    return tn


# ---------------------------------------------------------------------------
# kernels
# ---------------------------------------------------------------------------

def _forward_kernel(eps_ref, loc_ref, scale_ref, bias_ref, z_ref, logp_ref):
    """Per row-tile: affine transform of eps and lane-dense log-prob reduce."""
    eps = eps_ref[...]                                      # (tn, d) f32
    z_ref[...] = loc_ref[...] + scale_ref[...] * eps        # broadcast rows
    tn = eps.shape[0]
    row_sq = jnp.sum(eps * eps, axis=-1)                    # (tn,)
    # bias = -0.5*D*log(2*pi) - sum(log_scale), precomputed in the wrapper.
    logp_ref[...] = bias_ref[...] - 0.5 * row_sq.reshape(1, tn)  # (1, tn)


def _log_prob_kernel(z_ref, loc_ref, inv_scale_ref, bias_ref, logp_ref):
    """Per row-tile: normalize samples and lane-dense reduce over features."""
    eps = (z_ref[...] - loc_ref[...]) * inv_scale_ref[...]  # (tn, d)
    tn = eps.shape[0]
    row_sq = jnp.sum(eps * eps, axis=-1)                    # (tn,)
    logp_ref[...] = bias_ref[...] - 0.5 * row_sq.reshape(1, tn)  # (1, tn)


# ---------------------------------------------------------------------------
# wrappers
# ---------------------------------------------------------------------------

def base_dist_forward(num_samples, loc, log_scale, seed=0, max_tile_rows=4096):
    """Draw `num_samples` samples and their log probability.

    Returns (z (N, D) f32, log_p (N,) f32).
    """
    n = int(num_samples)
    d = int(loc.shape[-1])
    loc = loc.reshape(1, d).astype(jnp.float32)
    log_scale = log_scale.reshape(1, d).astype(jnp.float32)

    tn = _pick_tile_rows(n, d, max_tile_rows)
    num_tiles = pl.cdiv(n, tn)
    n_pad = num_tiles * tn

    # Hoisted parameter work (done once, not once per grid step).
    scale = jnp.exp(log_scale)                                       # (1, d)
    bias = (jnp.float32(-0.5 * d * math.log(2.0 * math.pi))
            - jnp.sum(log_scale)).reshape(1, 1).astype(jnp.float32)  # (1, 1)

    # eps from the standard JAX RNG (portable; TPU hw PRNG has no interpret
    # lowering).  Padded rows are sliced away below.
    eps = jax.random.normal(jax.random.PRNGKey(int(seed)), (n_pad, d),
                            dtype=jnp.float32)

    cost = pl.CostEstimate(
        flops=4 * n_pad * d,
        transcendentals=0,
        bytes_accessed=2 * n_pad * d * 4 + n_pad * 4 + (2 * d + 1) * 4,
    )

    z, logp = pl.pallas_call(
        _forward_kernel,
        out_shape=(
            jax.ShapeDtypeStruct((n_pad, d), jnp.float32),
            jax.ShapeDtypeStruct((num_tiles, tn), jnp.float32),
        ),
        grid=(num_tiles,),
        in_specs=[
            pl.BlockSpec((tn, d), lambda i: (i, 0)),   # eps
            pl.BlockSpec((1, d), lambda i: (0, 0)),    # loc
            pl.BlockSpec((1, d), lambda i: (0, 0)),    # exp(log_scale)
            pl.BlockSpec((1, 1), lambda i: (0, 0)),    # logp bias scalar
        ],
        out_specs=(
            pl.BlockSpec((tn, d), lambda i: (i, 0)),   # z
            pl.BlockSpec((1, tn), lambda i: (i, 0)),   # log_p (lane dense)
        ),
        compiler_params=pltpu.CompilerParams(
            dimension_semantics=("parallel",),
            vmem_limit_bytes=48 << 20,
        ),
        cost_estimate=cost,
    )(eps, loc, scale, bias)

    return z[:n], logp.reshape(-1)[:n]


def base_dist_log_prob(z, loc, log_scale, max_tile_rows=4096):
    """Log probability for a batch of samples z (N, D).  Returns (N,) f32."""
    n, d = z.shape
    z = z.astype(jnp.float32)
    loc = loc.reshape(1, d).astype(jnp.float32)
    log_scale = log_scale.reshape(1, d).astype(jnp.float32)

    tn = _pick_tile_rows(n, d, max_tile_rows)
    num_tiles = pl.cdiv(n, tn)
    n_pad = num_tiles * tn
    if n_pad != n:
        z = jnp.pad(z, ((0, n_pad - n), (0, 0)))

    # Hoisted parameter work.
    inv_scale = jnp.exp(-log_scale)                                  # (1, d)
    bias = (jnp.float32(-0.5 * d * math.log(2.0 * math.pi))
            - jnp.sum(log_scale)).reshape(1, 1).astype(jnp.float32)  # (1, 1)

    cost = pl.CostEstimate(
        flops=4 * n_pad * d,
        transcendentals=0,
        bytes_accessed=n_pad * d * 4 + n_pad * 4 + (2 * d + 1) * 4,
    )

    logp = pl.pallas_call(
        _log_prob_kernel,
        out_shape=jax.ShapeDtypeStruct((num_tiles, tn), jnp.float32),
        grid=(num_tiles,),
        in_specs=[
            pl.BlockSpec((tn, d), lambda i: (i, 0)),   # z
            pl.BlockSpec((1, d), lambda i: (0, 0)),    # loc
            pl.BlockSpec((1, d), lambda i: (0, 0)),    # exp(-log_scale)
            pl.BlockSpec((1, 1), lambda i: (0, 0)),    # logp bias scalar
        ],
        out_specs=pl.BlockSpec((1, tn), lambda i: (i, 0)),  # lane dense
        compiler_params=pltpu.CompilerParams(
            dimension_semantics=("parallel",),
            vmem_limit_bytes=48 << 20,
        ),
        cost_estimate=cost,
    )(z, loc, inv_scale, bias)

    return logp.reshape(-1)[:n]


# ---------------------------------------------------------------------------
# demo / correctness check
# ---------------------------------------------------------------------------

if __name__ == "__main__":
    d = 32
    key = jax.random.PRNGKey(0)
    k_loc, k_scale, k_z, k_z2 = jax.random.split(key, 4)

    # Deterministic parameter init (diagonal-Gaussian base distribution).
    loc = (0.1 * jax.random.normal(k_loc, (1, d))).astype(jnp.float32)
    log_scale = (0.05 * jax.random.normal(k_scale, (1, d))).astype(jnp.float32)

    const = -0.5 * d * math.log(2.0 * math.pi)

    def ref_log_prob(z):
        eps = (z - loc) * jnp.exp(-log_scale)
        return const - jnp.sum(log_scale) - 0.5 * jnp.sum(eps * eps, axis=-1)

    # --- forward: sample + log_prob (single tile) ---
    num_samples = 8
    z, log_p = base_dist_forward(num_samples, loc, log_scale, seed=0)
    z = jax.block_until_ready(z)
    log_p = jax.block_until_ready(log_p)

    assert z.shape == (num_samples, d)
    assert log_p.shape == (num_samples,)
    assert bool(jnp.all(jnp.isfinite(z)))
    assert bool(jnp.all(jnp.isfinite(log_p)))
    assert jnp.allclose(log_p, ref_log_prob(z), atol=1e-3, rtol=1e-4)

    # --- forward: multi-tile + padded path (n not a multiple of the tile) ---
    n2 = 20
    z_m, log_p_m = base_dist_forward(n2, loc, log_scale, seed=1)
    z_m = jax.block_until_ready(z_m)
    log_p_m = jax.block_until_ready(log_p_m)
    assert z_m.shape == (n2, d) and log_p_m.shape == (n2,)
    assert jnp.allclose(log_p_m, ref_log_prob(z_m), atol=1e-3, rtol=1e-4)

    # --- log_prob kernel vs. pure-JAX reference on arbitrary points ---
    z2 = jax.random.normal(k_z, (num_samples, d)).astype(jnp.float32)
    lp2 = jax.block_until_ready(base_dist_log_prob(z2, loc, log_scale))
    assert jnp.allclose(lp2, ref_log_prob(z2), atol=1e-4, rtol=1e-5)

    # multi-tile log_prob
    z3 = jax.random.normal(k_z2, (n2, d)).astype(jnp.float32)
    lp3 = jax.block_until_ready(base_dist_log_prob(z3, loc, log_scale))
    assert lp3.shape == (n2,)
    assert jnp.allclose(lp3, ref_log_prob(z3), atol=1e-4, rtol=1e-5)

    # consistency: log_prob(forward samples) == forward's log_p
    lp_again = jax.block_until_ready(base_dist_log_prob(z, loc, log_scale))
    assert jnp.allclose(lp_again, log_p, atol=1e-3, rtol=1e-4)

    print("KERNEL_OK")
</pallas_src>

<mosaic_0001>
module attributes {stable_mosaic.version = 11 : i64} {
  func.func @_forward_kernel(%arg0: i32, %arg1: memref<8x32xf32, #tpu.memory_space<vmem>>, %arg2: memref<1x32xf32, #tpu.memory_space<vmem>>, %arg3: memref<1x32xf32, #tpu.memory_space<vmem>>, %arg4: memref<1x1xf32, #tpu.memory_space<vmem>>, %arg5: memref<8x32xf32, #tpu.memory_space<vmem>>, %arg6: memref<1x8xf32, #tpu.memory_space<vmem>>) attributes {dimension_semantics = [#tpu.dimension_semantics<parallel>], iteration_bounds = array<i64: 1>, scalar_prefetch = 0 : i64, scratch_operands = 0 : i64, tpu.core_type = #tpu.core_type<tc>, window_params = [{transform_indices = @transform_0, window_bounds = array<i64: 8, 32>}, {pipeline_mode = #tpu.pipeline_mode<synchronous>, transform_indices = @transform_1, window_bounds = array<i64: 1, 32>}, {pipeline_mode = #tpu.pipeline_mode<synchronous>, transform_indices = @transform_2, window_bounds = array<i64: 1, 32>}, {pipeline_mode = #tpu.pipeline_mode<synchronous>, transform_indices = @transform_3, window_bounds = array<i64: 1, 1>}, {transform_indices = @transform_4, window_bounds = array<i64: 8, 32>}, {transform_indices = @transform_5, window_bounds = array<i64: 1, 8>}]} {
    %c0 = arith.constant 0 : index
    %c0_0 = arith.constant 0 : index
    %0 = vector.load %arg1[%c0, %c0_0] : memref<8x32xf32, #tpu.memory_space<vmem>>, vector<8x32xf32>
    %c0_1 = arith.constant 0 : index
    %c0_2 = arith.constant 0 : index
    %1 = vector.load %arg2[%c0_1, %c0_2] : memref<1x32xf32, #tpu.memory_space<vmem>>, vector<1x32xf32>
    %c0_3 = arith.constant 0 : index
    %c0_4 = arith.constant 0 : index
    %2 = vector.load %arg3[%c0_3, %c0_4] : memref<1x32xf32, #tpu.memory_space<vmem>>, vector<1x32xf32>
    %3 = vector.broadcast %2 : vector<1x32xf32> to vector<8x32xf32>
    %4 = arith.mulf %3, %0 : vector<8x32xf32>
    %5 = vector.broadcast %1 : vector<1x32xf32> to vector<8x32xf32>
    %6 = arith.addf %5, %4 : vector<8x32xf32>
    %c0_5 = arith.constant 0 : index
    %c0_6 = arith.constant 0 : index
    %7 = vector.load %arg5[%c0_5, %c0_6] : memref<8x32xf32, #tpu.memory_space<vmem>>, vector<8x32xf32>
    tpu.vector_store %arg5[%c0_5, %c0_6], %6 {strides = array<i32>} : memref<8x32xf32, #tpu.memory_space<vmem>>, vector<8x32xf32>,
    %8 = arith.mulf %0, %0 : vector<8x32xf32>
    %cst = arith.constant dense<0.000000e+00> : vector<8xf32>
    %9 = vector.multi_reduction <add>, %8, %cst [1] : vector<8x32xf32> to vector<8xf32>
    %c0_7 = arith.constant 0 : index
    %c0_8 = arith.constant 0 : index
    %10 = vector.load %arg4[%c0_7, %c0_8] : memref<1x1xf32, #tpu.memory_space<vmem>>, vector<1x1xf32>
    %11 = vector.shape_cast %9 : vector<8xf32> to vector<1x8xf32>
    %cst_9 = arith.constant 5.000000e-01 : f32
    %12 = vector.broadcast %cst_9 : f32 to vector<1x8xf32>
    %13 = arith.mulf %12, %11 : vector<1x8xf32>
    %14 = vector.broadcast %10 : vector<1x1xf32> to vector<1x8xf32>
    %15 = arith.subf %14, %13 : vector<1x8xf32>
    %c0_10 = arith.constant 0 : index
    %c0_11 = arith.constant 0 : index
    %16 = vector.load %arg6[%c0_10, %c0_11] : memref<1x8xf32, #tpu.memory_space<vmem>>, vector<1x8xf32>
    tpu.vector_store %arg6[%c0_10, %c0_11], %15 {strides = array<i32>} : memref<1x8xf32, #tpu.memory_space<vmem>>, vector<1x8xf32>,
    return
  }
  func.func @transform_0(%arg0: i32) -> (i32, i32) {
    %c0_i32 = arith.constant 0 : i32
    %c0_i32_0 = arith.constant 0 : i32
    return %arg0, %c0_i32 : i32, i32
  }
  func.func @transform_1(%arg0: i32) -> (i32, i32) {
    %c0_i32 = arith.constant 0 : i32
    %c0_i32_0 = arith.constant 0 : i32
    %c0_i32_1 = arith.constant 0 : i32
    return %c0_i32, %c0_i32_0 : i32, i32
  }
  func.func @transform_2(%arg0: i32) -> (i32, i32) {
    %c0_i32 = arith.constant 0 : i32
    %c0_i32_0 = arith.constant 0 : i32
    %c0_i32_1 = arith.constant 0 : i32
    return %c0_i32, %c0_i32_0 : i32, i32
  }
  func.func @transform_3(%arg0: i32) -> (i32, i32) {
    %c0_i32 = arith.constant 0 : i32
    %c0_i32_0 = arith.constant 0 : i32
    %c0_i32_1 = arith.constant 0 : i32
    return %c0_i32, %c0_i32_0 : i32, i32
  }
  func.func @transform_4(%arg0: i32) -> (i32, i32) {
    %c0_i32 = arith.constant 0 : i32
    %c0_i32_0 = arith.constant 0 : i32
    return %arg0, %c0_i32 : i32, i32
  }
  func.func @transform_5(%arg0: i32) -> (i32, i32) {
    %c0_i32 = arith.constant 0 : i32
    %c0_i32_0 = arith.constant 0 : i32
    return %arg0, %c0_i32 : i32, i32
  }
}

</mosaic_0001>

<llo_original>
// kernel: tpu_custom_call.1
$region0: #{tpu_custom_call.1}
  #allocation0 [shape = 'u32[]', space=smem, size = 0x4, offset = 0x4, fixed_abs, tag = 'smem constant byte address 0x4 - core index']
  #allocation1 [shape = 'u32[144,128]{1,0:T(1,128)}', space=vmem, size = 0x12000, scoped, tag = 'internal scratch']
  #allocation2 [shape = 'f32[1,1]{1,0:T(1,128)S(1)}', space=vmem, size = 0x200, scoped, tag = 'scoped memory for tpu_custom_call.1']
  %s0 = inlined_call_operand.hbm [shape: f32[8,32], index: 0, kind: input, shape index: {}]
  %s1 = inlined_call_operand.vmem [shape: f32[1,32], index: 1, kind: input, shape index: {}]
  %s2 = inlined_call_operand.vmem [shape: f32[1,32], index: 2, kind: input, shape index: {}]
  %s3 = inlined_call_operand.<no memory space> [shape: f32[1,1], index: 3, kind: input, shape index: {}]
  %s4 = inlined_call_operand.hbm [shape: f32[8,32], index: 4, kind: output, shape index: {0}]
  %s5 = inlined_call_operand.hbm [shape: f32[1,8], index: 5, kind: output, shape index: {1}]
  %6 = xla_tuple %s4, %s5
  %s7 = sld [smem:[#allocation0]]
  $region38: #{tpu_custom_call.1} parent=0
    _
  %s9 = ssub.s32 1, %s7
  %s10 = scalar_select 0, %s9, %s7
  %v11 = vstv %s3
  %12 = vst [vmem:[#allocation2] sm:$0x1] %v11
  $region1: #{tpu_custom_call.1} parent=0
    #allocation3 [shape = 'u8[4096]{0}', space=vmem, size = 0x1000, scoped, tag = 'input window, operand 0, single buffered']
    #allocation4 [shape = 's32[1]{0}', space=sflag, size = 0x4, scoped, tag = 'scoped memory for tpu_custom_call.1']
    #allocation5 [shape = 's32[1]{0}', space=sflag, size = 0x4, scoped, tag = 'scoped memory for tpu_custom_call.1']
    #allocation6 [shape = 'u8[4096]{0}', space=vmem, size = 0x1000, scoped, tag = 'output window, operand 0, single buffered']
    #allocation7 [shape = 'u8[512]{0}', space=vmem, size = 0x400, scoped, tag = 'output window, operand 1, single buffered']
    #allocation8 [shape = 's32[1]{0}', space=sflag, size = 0x4, scoped, tag = 'scoped memory for tpu_custom_call.1']
    %13 = vsyncpa [#allocation4], 0
    %14 = vsyncpa [#allocation5], 0
    %15 = vsyncpa [#allocation8], 0
    // Predicated region
    $region2: #{tpu_custom_call.1} parent=1 // pred_check
      _
    $region3: #{tpu_custom_call.1} parent=1 // pred_check_branch
      %17 = sbr.rel (0) target = $region5
    $region4: #{tpu_custom_call.1} parent=1 // pred_region
      %s19 = ssub.s32 128, 128
      %20 = vsyncadd [#allocation4], %s19
      %s22 = sshll.u32 [#allocation3], 4
      %s23 = int_to_ptr.vmem [resolvable:$true] %s22
      %25 = dma.hbm_to_vmem [thread:$0]  %s0, 128, %s23, [#allocation4]
    $region5: #{tpu_custom_call.1} parent=1 // pred_fallthru
      _
    // Predicated region
    $region6: #{tpu_custom_call.1} parent=1 // pred_check
      _
    $region7: #{tpu_custom_call.1} parent=1 // pred_check_branch
      %27 = sbr.rel (0) target = $region9
    $region8: #{tpu_custom_call.1} parent=1 // pred_region
      _
    $region9: #{tpu_custom_call.1} parent=1 // pred_fallthru
      _
    // Predicated region
    $region10: #{tpu_custom_call.1} parent=1 // pred_check
      _
    $region11: #{tpu_custom_call.1} parent=1 // pred_check_branch
      %29 = sbr.rel (0) target = $region13
    $region12: #{tpu_custom_call.1} parent=1 // pred_region
      _
    $region13: #{tpu_custom_call.1} parent=1 // pred_fallthru
      _
    // Predicated region
    $region14: #{tpu_custom_call.1} parent=1 // pred_check
      _
    $region15: #{tpu_custom_call.1} parent=1 // pred_check_branch
      %31 = sbr.rel (0) target = $region17
    $region16: #{tpu_custom_call.1} parent=1 // pred_region
      _
    $region17: #{tpu_custom_call.1} parent=1 // pred_fallthru
      _
    // Predicated region
    $region18: #{tpu_custom_call.1} parent=1 // pred_check
      _
    $region19: #{tpu_custom_call.1} parent=1 // pred_check_branch
      %33 = sbr.rel (0) target = $region21
    $region20: #{tpu_custom_call.1} parent=1 // pred_region
      %34 = dma.done [#allocation4], 128
    $region21: #{tpu_custom_call.1} parent=1 // pred_fallthru
      _
    %v35 = vld [vmem:[#allocation3] sm:$0xff]
    %v36 = vld [vmem:[%s1] sm:$0x1]
    %v37 = vld [vmem:[%s2] sm:$0x1]
    %v39 = vlaneseq
    %v40 = vshrl.u32 %v39, 7
    %v41 = vsub.s32 0, %v40
    %v42 = vrot.slane %v37, %v41
    %v44 = vmul.f32 %v42, %v35
    %v46 = vlaneseq
    %v47 = vshrl.u32 %v46, 7
    %v48 = vsub.s32 0, %v47
    %v49 = vrot.slane %v36, %v48
    %v51 = vadd.f32 %v49, %v44
    %vm52 = vcmask 261120
    %53 = vst.msk [vmem:[#allocation6] sm:$0xff] %vm52, %v51
    %v54 = vmul.f32 %v35, %v35
    %v55 = vsel %vm52, %v54, 0.0
    %56 = vadd.xlane.f32.xlu0 %v55
    %v57 = vpop.xlane.xlu0 %56
    %v58 = vld [vmem:[#allocation2] sm:$0x1]
    %v59 = vmul.f32 %v57, 0.5
    %61 = vset.pattern.permute.xlu0 0
    %62 = vperm.xlu0 %61, %v58
    %v63 = vpop.permute.xlu0 %62
    %v65 = vlaneseq
    %v66 = vshrl.u32 %v65, 7
    %v67 = vsub.s32 0, %v66
    %v68 = vrot.slane %v63, %v67
    %v69 = vsub.f32 %v68, %v59
    %v71 = vlaneseq
    %v72 = vand.u32 %v71, 127
    %v73 = vlaneseq
    %v74 = vshrl.u32 %v73, 7
    %v75 = vsub.s32 %v72, %v74
    %v76 = vrot.slane %v69, %v75
    %vm78 = vcmask 57344
    %79 = vst.msk [vmem:[#allocation7] sm:$0x1] %vm78, %v76
    // Predicated region
    $region22: #{tpu_custom_call.1} parent=1 // pred_check
      _
    $region23: #{tpu_custom_call.1} parent=1 // pred_check_branch
      %81 = sbr.rel (0) target = $region25
    $region24: #{tpu_custom_call.1} parent=1 // pred_region
      %s83 = ssub.s32 128, 128
      %84 = vsyncadd [#allocation5], %s83
      %s86 = sshll.u32 [#allocation6], 4
      %s87 = int_to_ptr.vmem [resolvable:$true] %s86
      %89 = dma.vmem_to_hbm [thread:$0]  %s87, 128, %s4, [#allocation5]
    $region25: #{tpu_custom_call.1} parent=1 // pred_fallthru
      _
    // Predicated region
    $region26: #{tpu_custom_call.1} parent=1 // pred_check
      _
    $region27: #{tpu_custom_call.1} parent=1 // pred_check_branch
      %91 = sbr.rel (0) target = $region29
    $region28: #{tpu_custom_call.1} parent=1 // pred_region
      %s93 = ssub.s32 16, 16
      %94 = vsyncadd [#allocation8], %s93
      %s96 = sshll.u32 [#allocation7], 4
      %s97 = int_to_ptr.vmem [resolvable:$true] %s96
      %99 = dma.vmem_to_hbm [thread:$0]  %s97, 16, %s5, [#allocation8]
    $region29: #{tpu_custom_call.1} parent=1 // pred_fallthru
      _
    // Predicated region
    $region30: #{tpu_custom_call.1} parent=1 // pred_check
      _
    $region31: #{tpu_custom_call.1} parent=1 // pred_check_branch
      %101 = sbr.rel (0) target = $region33
    $region32: #{tpu_custom_call.1} parent=1 // pred_region
      %102 = dma.done [#allocation5], 128
    $region33: #{tpu_custom_call.1} parent=1 // pred_fallthru
      _
    // Predicated region
    $region34: #{tpu_custom_call.1} parent=1 // pred_check
      _
    $region35: #{tpu_custom_call.1} parent=1 // pred_check_branch
      %104 = sbr.rel (0) target = $region37
    $region36: #{tpu_custom_call.1} parent=1 // pred_region
      %105 = dma.done [#allocation8], 16
    $region37: #{tpu_custom_call.1} parent=1 // pred_fallthru
      _
    %106 = vsyncpa [#allocation4], 1
    %107 = vsyncpa [#allocation5], 1
    %108 = vsyncpa [#allocation8], 1

</llo_original>
